<compile_context>
chip_gen: v5e
topology: v5e:2x2
jax: 0.10.0
libtpu: 0.0.40
codegen_flags: <defaults>
</compile_context>

<pallas_src>
import numpy as np
import jax
import jax.numpy as jnp
from jax.experimental import pallas as pl
from jax.experimental.pallas import tpu as pltpu

# ---------------- synthetic featurizer config (deterministic) ----------------
SAMPLE_RATE = 16000
N_FFT = 128
WIN_LENGTH = 128
HOP_LENGTH = 64
N_FILT = 64
N_FREQ = N_FFT // 2 + 1        # 65
PREEMPH = 0.97
LOG_EPS = 1e-20
STD_EPS = 1e-5                 # constant in normalize_batch
PAD_TO = 16

LANE = 128                     # TPU lane width


def _hann_window(win_length, n_fft):
    # TODO(synk): built with periodic=False (denominator win_length-1); verify against the
    # reference torch.hann_window settings.
    n = np.arange(win_length, dtype=np.float64)
    w = 0.5 - 0.5 * np.cos(2.0 * np.pi * n / (win_length - 1))
    out = np.zeros(n_fft, dtype=np.float64)
    pad_left = (n_fft - win_length) // 2
    out[pad_left:pad_left + win_length] = w
    return out


def _mel_filterbank(sr, n_fft, n_mels, fmin=0.0, fmax=None):
    # Deterministic triangular mel filterbank (synthetic stand-in for librosa.filters.mel).
    if fmax is None:
        fmax = sr / 2.0
    n_freq = n_fft // 2 + 1

    def hz_to_mel(f): return 2595.0 * np.log10(1.0 + f / 700.0)
    def mel_to_hz(m): return 700.0 * (10.0 ** (m / 2595.0) - 1.0)

    mel_pts = np.linspace(hz_to_mel(fmin), hz_to_mel(fmax), n_mels + 2)
    hz_pts = mel_to_hz(mel_pts)
    freqs = np.linspace(0.0, sr / 2.0, n_freq)
    fb = np.zeros((n_mels, n_freq), dtype=np.float64)
    for m in range(n_mels):
        l, c, r = hz_pts[m], hz_pts[m + 1], hz_pts[m + 2]
        up = (freqs - l) / max(c - l, 1e-9)
        down = (r - freqs) / max(r - c, 1e-9)
        fb[m] = np.maximum(0.0, np.minimum(up, down))
    return fb


def _build_constants():
    # Packed windowed real-DFT matrix, single 128-lane output:
    #   lanes 0..64   = window * cos(2*pi*n*k/N),  k = 0..64   (real part)
    #   lanes 65..127 = window * sin(2*pi*n*k/N),  k = 1..63   (imag part; k=0,64 are exactly 0)
    # Power spectrum is then simply dft*dft per lane; the fold re^2+im^2 is absorbed into the
    # mel matrix by duplicating its freq rows 1..63 into rows 65..127 (exact, no approximation).
    n = np.arange(N_FFT, dtype=np.float64)[:, None]
    k = np.arange(N_FREQ, dtype=np.float64)[None, :]
    ang = 2.0 * np.pi * n * k / N_FFT
    window = _hann_window(WIN_LENGTH, N_FFT)[:, None]
    cosw = window * np.cos(ang)                      # [128, 65]
    sinw = window * np.sin(ang)                      # [128, 65] (sign irrelevant: squared)
    w_pack = np.zeros((N_FFT, LANE), dtype=np.float32)
    w_pack[:, 0:N_FREQ] = cosw
    w_pack[:, N_FREQ:LANE] = sinw[:, 1:N_FREQ - 1]   # 63 sin lanes (k = 1..63)

    fb = _mel_filterbank(SAMPLE_RATE, N_FFT, N_FILT)     # [n_filt, n_freq]
    fb_pack = np.zeros((LANE, LANE), dtype=np.float32)
    fb_pack[0:N_FREQ, 0:N_FILT] = fb.T                   # freq rows 0..64 (cos^2 contribution)
    fb_pack[N_FREQ:LANE, 0:N_FILT] = fb.T[1:N_FREQ - 1]  # freq rows 1..63 again (sin^2 contribution)
    return jnp.asarray(w_pack), jnp.asarray(fb_pack)


# ------------------------------- Pallas kernel --------------------------------
def _featurizer_kernel(seq_len_ref, rows_ref, wpack_ref, fb_ref, out_ref):
    b = pl.program_id(0)
    time_k = out_ref.shape[2]                             # padded-to-PAD_TO frame count (static)

    # In-kernel framing: rows are 64-wide; frame i = rows[i] ++ rows[i+1]  (hop=64, n_fft=128).
    rows = rows_ref[0]                                    # [n_rows_pad, 64]
    frames = jnp.concatenate(
        [rows[0:time_k, :], rows[1:time_k + 1, :]], axis=1)            # [time_k, 128]

    # Fused windowed real/imag DFT in one 128-lane MXU pass; power is a single square.
    dft = jnp.dot(frames, wpack_ref[...], preferred_element_type=jnp.float32)  # [time_k, 128]
    power = dft * dft                                     # lanes: re_k^2 (0..64) | im_k^2 (65..127)

    # Mel projection (fold of re^2+im^2 is baked into fb_pack rows) + log.
    mel = jnp.dot(power, fb_ref[...], preferred_element_type=jnp.float32)      # [time_k, 128]
    logmel = jnp.log(mel + LOG_EPS)

    # Per-feature normalization over valid frames (torch unbiased std), then mask padding.
    sl = seq_len_ref[b]                                   # int32 scalar from SMEM
    t = jax.lax.broadcasted_iota(jnp.int32, (time_k, 1), 0)
    valid = t < sl                                        # [time_k, 1]
    cnt = jnp.maximum(sl, 1).astype(jnp.float32)          # guard sl == 0
    denom = jnp.maximum(sl - 1, 1).astype(jnp.float32)    # guard sl <= 1
    mean = jnp.sum(jnp.where(valid, logmel, 0.0), axis=0, keepdims=True) / cnt
    diff = jnp.where(valid, logmel - mean, 0.0)           # masked & centered
    var = jnp.sum(diff * diff, axis=0, keepdims=True) / denom
    inv_std = pl.reciprocal(jnp.sqrt(var) + STD_EPS, approx=True)   # [1, 128], EUP slot
    normed = diff * inv_std                               # invalid frames stay exactly 0

    # Lane-dense final layout: [n_filt, time_k] (XLU transpose).
    out_ref[0] = normed.T[:N_FILT, :]


# ------------------------------- wrapper (glue) --------------------------------
def audio_preprocessing(x, length):
    """x: [B, T] float32 waveform, length: [B] int32 valid sample counts.
    Returns (processed_signal [B, N_FILT, ceil(n_frames/PAD_TO)*PAD_TO] float32, processed_length [B])."""
    B, T = x.shape
    x = x.astype(jnp.float32)

    # get_seq_len
    seq_len = jnp.ceil(length.astype(jnp.float32) / HOP_LENGTH).astype(jnp.int32)

    # pre-emphasis + torch.stft(center=True) reflect pad (one cheap fused XLA pass over T samples).
    y = jnp.concatenate([x[:, :1], x[:, 1:] - PREEMPH * x[:, :-1]], axis=1)
    pad = N_FFT // 2
    xp = jnp.pad(y, ((0, 0), (pad, pad)), mode="reflect")            # [B, T + 128]

    n_frames = 1 + T // HOP_LENGTH
    time_k = ((n_frames + PAD_TO - 1) // PAD_TO) * PAD_TO            # exact pad_to output extent
    n_rows = time_k + 8                                              # sublane-aligned, >= time_k+1
    total = n_rows * HOP_LENGTH
    xp = jnp.pad(xp, ((0, 0), (0, total - xp.shape[1])))             # zero-pad tail frames
    rows = xp.reshape(B, n_rows, HOP_LENGTH)                         # no duplicated-sample gather

    w_pack, fb_pack = _build_constants()

    out = pl.pallas_call(
        _featurizer_kernel,
        out_shape=jax.ShapeDtypeStruct((B, N_FILT, time_k), jnp.float32),
        grid_spec=pltpu.PrefetchScalarGridSpec(
            num_scalar_prefetch=1,
            grid=(B,),
            in_specs=[
                pl.BlockSpec((1, n_rows, HOP_LENGTH), lambda b, sl: (b, 0, 0)),
                pl.BlockSpec((N_FFT, LANE), lambda b, sl: (0, 0)),
                pl.BlockSpec((LANE, LANE), lambda b, sl: (0, 0)),
            ],
            out_specs=pl.BlockSpec((1, N_FILT, time_k), lambda b, sl: (b, 0, 0)),
        ),
        compiler_params=pltpu.CompilerParams(
            dimension_semantics=("parallel",),
            vmem_limit_bytes=32 * 1024 * 1024,
        ),
    )(seq_len, rows, w_pack, fb_pack)

    # Kernel already emits the exact pad_to-padded, masked output — no post-processing.
    return out, seq_len


if __name__ == "__main__":
    key = jax.random.PRNGKey(0)
    B, T = 2, 512
    x = jax.random.normal(key, (B, T), dtype=jnp.float32)
    length = jnp.array([512, 400], dtype=jnp.int32)

    processed_signal, processed_length = jax.jit(audio_preprocessing)(x, length)
    jax.block_until_ready((processed_signal, processed_length))

    assert processed_signal.shape == (B, N_FILT, PAD_TO)   # 9 frames padded to 16
    assert processed_length.shape == (B,)
    assert bool(jnp.all(jnp.isfinite(processed_signal)))
    # padded / invalid frames must be exactly zero
    assert bool(jnp.all(processed_signal[0, :, 8:] == 0.0))
    assert bool(jnp.all(processed_signal[1, :, 7:] == 0.0))
    print("KERNEL_OK")
</pallas_src>

<mosaic_0001>
module attributes {stable_mosaic.version = 11 : i64} {
  func.func @_featurizer_kernel(%arg0: i32, %arg1: memref<2xi32, #tpu.memory_space<smem>>, %arg2: memref<1x24x64xf32, #tpu.memory_space<vmem>>, %arg3: memref<128x128xf32, #tpu.memory_space<vmem>>, %arg4: memref<128x128xf32, #tpu.memory_space<vmem>>, %arg5: memref<1x64x16xf32, #tpu.memory_space<vmem>>) attributes {dimension_semantics = [#tpu.dimension_semantics<parallel>], iteration_bounds = array<i64: 2>, scalar_prefetch = 1 : i64, scratch_operands = 0 : i64, tpu.core_type = #tpu.core_type<tc>, window_params = [{transform_indices = @transform_0, window_bounds = array<i64: 1, 24, 64>}, {pipeline_mode = #tpu.pipeline_mode<synchronous>, transform_indices = @transform_1, window_bounds = array<i64: 128, 128>}, {pipeline_mode = #tpu.pipeline_mode<synchronous>, transform_indices = @transform_2, window_bounds = array<i64: 128, 128>}, {transform_indices = @transform_3, window_bounds = array<i64: 1, 64, 16>}]} {
    %c0 = arith.constant 0 : index
    %c0_0 = arith.constant 0 : index
    %c0_1 = arith.constant 0 : index
    %0 = vector.load %arg2[%c0, %c0_0, %c0_1] : memref<1x24x64xf32, #tpu.memory_space<vmem>>, vector<1x24x64xf32>
    %1 = vector.shape_cast %0 : vector<1x24x64xf32> to vector<24x64xf32>
    %2 = vector.extract_strided_slice %1 {offsets = [0, 0], sizes = [16, 64], strides = [1, 1]} : vector<24x64xf32> to vector<16x64xf32>
    %3 = vector.extract_strided_slice %1 {offsets = [1, 0], sizes = [16, 64], strides = [1, 1]} : vector<24x64xf32> to vector<16x64xf32>
    %4 = tpu.concatenate %2, %3 in 1 : vector<16x64xf32>, vector<16x64xf32> -> vector<16x128xf32>
    %c0_2 = arith.constant 0 : index
    %c0_3 = arith.constant 0 : index
    %5 = vector.load %arg3[%c0_2, %c0_3] : memref<128x128xf32, #tpu.memory_space<vmem>>, vector<128x128xf32>
    %cst = arith.constant dense<0.000000e+00> : vector<16x128xf32>
    %6 = tpu.matmul %4, %5, %cst {dimension_numbers = #tpu.dot_dimension_numbers<[1], [0], [0], [1], [0, 0, 1, 1], [], []>} : vector<16x128xf32>, vector<128x128xf32>, vector<16x128xf32> -> vector<16x128xf32>
    %7 = arith.mulf %6, %6 : vector<16x128xf32>
    %c0_4 = arith.constant 0 : index
    %c0_5 = arith.constant 0 : index
    %8 = vector.load %arg4[%c0_4, %c0_5] : memref<128x128xf32, #tpu.memory_space<vmem>>, vector<128x128xf32>
    %cst_6 = arith.constant dense<0.000000e+00> : vector<16x128xf32>
    %9 = tpu.matmul %7, %8, %cst_6 {dimension_numbers = #tpu.dot_dimension_numbers<[1], [0], [0], [1], [0, 0, 1, 1], [], []>} : vector<16x128xf32>, vector<128x128xf32>, vector<16x128xf32> -> vector<16x128xf32>
    %cst_7 = arith.constant 9.99999968E-21 : f32
    %10 = vector.broadcast %cst_7 : f32 to vector<16x128xf32>
    %11 = arith.addf %9, %10 : vector<16x128xf32>
    %12 = math.log %11 : vector<16x128xf32>
    %13 = arith.index_cast %arg0 : i32 to index
    %14 = memref.load %arg1[%13] : memref<2xi32, #tpu.memory_space<smem>>
    %15 = tpu.iota {dimensions = array<i32: 0>} : vector<16x1xi32>
    %16 = vector.broadcast %14 : i32 to vector<16x1xi32>
    %17 = arith.cmpi slt, %15, %16 : vector<16x1xi32>
    %c1_i32 = arith.constant 1 : i32
    %18 = arith.maxsi %14, %c1_i32 : i32
    %19 = arith.sitofp %18 : i32 to f32
    %c1_i32_8 = arith.constant 1 : i32
    %20 = arith.subi %14, %c1_i32_8 : i32
    %c1_i32_9 = arith.constant 1 : i32
    %21 = arith.maxsi %20, %c1_i32_9 : i32
    %22 = arith.sitofp %21 : i32 to f32
    %cst_10 = arith.constant 0.000000e+00 : f32
    %23 = vector.shape_cast %17 : vector<16x1xi1> to vector<16x1xi1>
    %24 = vector.broadcast %23 : vector<16x1xi1> to vector<16x128xi1>
    %25 = vector.broadcast %cst_10 : f32 to vector<16x128xf32>
    %26 = arith.select %24, %12, %25 : vector<16x128xi1>, vector<16x128xf32>
    %cst_11 = arith.constant dense<0.000000e+00> : vector<128xf32>
    %27 = vector.multi_reduction <add>, %26, %cst_11 [0] : vector<16x128xf32> to vector<128xf32>
    %28 = vector.shape_cast %27 : vector<128xf32> to vector<1x128xf32>
    %29 = vector.broadcast %19 : f32 to vector<1x128xf32>
    %30 = arith.divf %28, %29 : vector<1x128xf32>
    %31 = vector.broadcast %30 : vector<1x128xf32> to vector<16x128xf32>
    %32 = arith.subf %12, %31 : vector<16x128xf32>
    %cst_12 = arith.constant 0.000000e+00 : f32
    %33 = vector.shape_cast %17 : vector<16x1xi1> to vector<16x1xi1>
    %34 = vector.broadcast %33 : vector<16x1xi1> to vector<16x128xi1>
    %35 = vector.broadcast %cst_12 : f32 to vector<16x128xf32>
    %36 = arith.select %34, %32, %35 : vector<16x128xi1>, vector<16x128xf32>
    %37 = arith.mulf %36, %36 : vector<16x128xf32>
    %cst_13 = arith.constant dense<0.000000e+00> : vector<128xf32>
    %38 = vector.multi_reduction <add>, %37, %cst_13 [0] : vector<16x128xf32> to vector<128xf32>
    %39 = vector.shape_cast %38 : vector<128xf32> to vector<1x128xf32>
    %40 = vector.broadcast %22 : f32 to vector<1x128xf32>
    %41 = arith.divf %39, %40 : vector<1x128xf32>
    %42 = math.sqrt %41 : vector<1x128xf32>
    %cst_14 = arith.constant 9.99999974E-6 : f32
    %43 = vector.broadcast %cst_14 : f32 to vector<1x128xf32>
    %44 = arith.addf %42, %43 : vector<1x128xf32>
    %45 = tpu.reciprocal %44 {approx = true} : vector<1x128xf32> -> vector<1x128xf32>
    %46 = vector.broadcast %45 : vector<1x128xf32> to vector<16x128xf32>
    %47 = arith.mulf %36, %46 : vector<16x128xf32>
    %48 = tpu.transpose %47, [1, 0] : vector<16x128xf32> -> vector<128x16xf32>
    %49 = vector.extract_strided_slice %48 {offsets = [0, 0], sizes = [64, 16], strides = [1, 1]} : vector<128x16xf32> to vector<64x16xf32>
    %c0_15 = arith.constant 0 : index
    %c0_16 = arith.constant 0 : index
    %c0_17 = arith.constant 0 : index
    %50 = vector.load %arg5[%c0_15, %c0_16, %c0_17] : memref<1x64x16xf32, #tpu.memory_space<vmem>>, vector<1x64x16xf32>
    %51 = vector.shape_cast %50 : vector<1x64x16xf32> to vector<64x16xf32>
    %52 = vector.shape_cast %49 : vector<64x16xf32> to vector<1x64x16xf32>
    tpu.vector_store %arg5[%c0_15, %c0_16, %c0_17], %52 {strides = array<i32>} : memref<1x64x16xf32, #tpu.memory_space<vmem>>, vector<1x64x16xf32>,
    return
  }
  func.func @transform_0(%arg0: i32, %arg1: memref<2xi32, #tpu.memory_space<smem>>) -> (i32, i32, i32) {
    %c0_i32 = arith.constant 0 : i32
    %c0_i32_0 = arith.constant 0 : i32
    %c0_i32_1 = arith.constant 0 : i32
    return %arg0, %c0_i32, %c0_i32_0 : i32, i32, i32
  }
  func.func @transform_1(%arg0: i32, %arg1: memref<2xi32, #tpu.memory_space<smem>>) -> (i32, i32) {
    %c0_i32 = arith.constant 0 : i32
    %c0_i32_0 = arith.constant 0 : i32
    %c0_i32_1 = arith.constant 0 : i32
    return %c0_i32, %c0_i32_0 : i32, i32
  }
  func.func @transform_2(%arg0: i32, %arg1: memref<2xi32, #tpu.memory_space<smem>>) -> (i32, i32) {
    %c0_i32 = arith.constant 0 : i32
    %c0_i32_0 = arith.constant 0 : i32
    %c0_i32_1 = arith.constant 0 : i32
    return %c0_i32, %c0_i32_0 : i32, i32
  }
  func.func @transform_3(%arg0: i32, %arg1: memref<2xi32, #tpu.memory_space<smem>>) -> (i32, i32, i32) {
    %c0_i32 = arith.constant 0 : i32
    %c0_i32_0 = arith.constant 0 : i32
    %c0_i32_1 = arith.constant 0 : i32
    return %arg0, %c0_i32, %c0_i32_0 : i32, i32, i32
  }
}

</mosaic_0001>

<llo_original>
// kernel: audio_preprocessing.1
$region0: #{audio_preprocessing.1}
  #allocation0 [shape = 'u32[]', space=smem, size = 0x4, offset = 0x4, fixed_abs, tag = 'smem constant byte address 0x4 - core index']
  #allocation1 [shape = 'u32[72,128]{1,0:T(1,128)}', space=vmem, size = 0x9000, scoped, tag = 'internal scratch']
  #allocation2 [shape = 's32[1]{0}', space=sflag, size = 0x4, scoped, tag = 'scoped memory for audio_preprocessing.1']
  #allocation3 [shape = 'u8[512]{0}', space=smem, size = 0x200, scoped, tag = 'prefetched SMEM operand 0']
  %s0 = inlined_call_operand.vmem [shape: s32[2], index: 0, kind: input, shape index: {}]
  %s1 = inlined_call_operand.vmem [shape: f32[2,24,64], index: 1, kind: input, shape index: {}]
  %s2 = inlined_call_operand.hbm [shape: f32[128,128], index: 2, kind: input, shape index: {}]
  %s3 = inlined_call_operand.hbm [shape: f32[128,128], index: 3, kind: input, shape index: {}]
  %s4 = inlined_call_operand.vmem [shape: f32[2,64,16], index: 4, kind: output, shape index: {}]
  %s5 = sld [smem:[#allocation0]]
  $region53: #{audio_preprocessing.1} parent=0
    _
  %s7 = ssub.s32 1, %s5
  %s8 = scalar_select 0, %s7, %s5
  %s10 = sshll.u32 %s0, 4
  %s11 = int_to_ptr.vmem [resolvable:$true] %s10
  %13 = dma.vmem_to_smem %s11, 16, [#allocation3], [#allocation2]
  %15 = dma.done [#allocation2], 16
  %16 = sfence
  $region1: #{audio_preprocessing.1} parent=0
    #allocation4 [shape = 'u8[65536]{0}', space=vmem, size = 0x10000, scoped, tag = 'input window, operand 2, single buffered']
    #allocation5 [shape = 's32[2]{0}', space=sflag, size = 0x8, scoped, tag = 'scoped memory for audio_preprocessing.1']
    #allocation6 [shape = 'u8[65536]{0}', space=vmem, size = 0x10000, scoped, tag = 'input window, operand 3, single buffered']
    #allocation7 [shape = 's32[1]{0}', space=sflag, size = 0x4, scoped, tag = 'scoped memory for audio_preprocessing.1']
    %17 = vsyncpa [#allocation5], 0
    %18 = vsyncpa [#allocation7], 0
    loop: start=0, step=1, limit=4
    $region2: #{audio_preprocessing.1} parent=1 // loop_pre_header
      _
    $region3: #{audio_preprocessing.1} parent=1 // loop_header
      %s20 = sphi 0, %s24
      %p21 = scmp.ge.s32.totalorder %s20, 4
      %s30 = sphi 0, %s32
      %s33 = sphi 0, %s30
      %s34 = sphi 0, %s33
      %s50 = sphi 0, %s34
      %s54 = sphi 0, %s54
      %s56 = sphi 0, %s54
      %s57 = sphi 0, %s56
      %s71 = sphi 0, %s57
      %s75 = sphi 0, %s75
      %s77 = sphi 0, %s75
      %s78 = sphi 0, %s77
      %s92 = sphi 0, %s78
      %s98 = sphi 0, %s100
      %s101 = sphi 0, %s98
      %s102 = sphi 0, %s101
      %s118 = sphi 0, %s102
    $region4: #{audio_preprocessing.1} parent=1 // loop_header_branch
      %23 = sbr.rel (%p21) target = $region8
    $region5: #{audio_preprocessing.1} parent=1 // loop_body
      %s25 = ssub.s32 %s20, 1
      %s26 = ssub.s32 %s20, 2
      %s27 = sadd.s32 %s20, 1
      %s28 = ssub.s32 %s20, %s27
      %p29 = scmp.eq.s32.totalorder %s28, 0
      %s31 = sadd.s32 %s30, 1
      %s32 = scalar_select %p29, %s30, %s31
      %p35 = pneg %p29
      %p36 = scmp.eq.s32.totalorder %s20, 1
      %p37 = por %p35, %p36
      %p38 = scmp.ne.s32.totalorder %s30, %s33
      %p39 = scmp.eq.s32.totalorder %s20, 0
      %p40 = por %p38, %p39
      %p41 = scmp.ne.s32.totalorder %s30, %s33
      %p42 = scmp.eq.s32.totalorder %s25, 1
      %p43 = por %p41, %p42
      %p44 = scmp.ne.s32.totalorder %s33, %s34
      %p45 = scmp.eq.s32.totalorder %s25, 0
      %p46 = por %p44, %p45
      %p47 = scmp.ne.s32.totalorder %s33, %s34
      %p48 = scmp.eq.s32.totalorder %s26, 1
      %p49 = por %p47, %p48
      %p51 = scmp.ne.s32.totalorder %s34, %s50
      %p52 = scmp.eq.s32.totalorder %s26, 0
      %p53 = por %p51, %p52
      %s55 = sadd.s32 %s54, 1
      %p58 = scmp.eq.s32.totalorder %s20, 1
      %p59 = scmp.ne.s32.totalorder %s54, %s56
      %p60 = scmp.eq.s32.totalorder %s20, 0
      %p61 = por %p59, %p60
      %p62 = scmp.ne.s32.totalorder %s54, %s56
      %p63 = scmp.eq.s32.totalorder %s25, 1
      %p64 = por %p62, %p63
      %p65 = scmp.ne.s32.totalorder %s56, %s57
      %p66 = scmp.eq.s32.totalorder %s25, 0
      %p67 = por %p65, %p66
      %p68 = scmp.ne.s32.totalorder %s56, %s57
      %p69 = scmp.eq.s32.totalorder %s26, 1
      %p70 = por %p68, %p69
      %p72 = scmp.ne.s32.totalorder %s57, %s71
      %p73 = scmp.eq.s32.totalorder %s26, 0
      %p74 = por %p72, %p73
      %s76 = sadd.s32 %s75, 1
      %p79 = scmp.eq.s32.totalorder %s20, 1
      %p80 = scmp.ne.s32.totalorder %s75, %s77
      %p81 = scmp.eq.s32.totalorder %s20, 0
      %p82 = por %p80, %p81
      %p83 = scmp.ne.s32.totalorder %s75, %s77
      %p84 = scmp.eq.s32.totalorder %s25, 1
      %p85 = por %p83, %p84
      %p86 = scmp.ne.s32.totalorder %s77, %s78
      %p87 = scmp.eq.s32.totalorder %s25, 0
      %p88 = por %p86, %p87
      %p89 = scmp.ne.s32.totalorder %s77, %s78
      %p90 = scmp.eq.s32.totalorder %s26, 1
      %p91 = por %p89, %p90
      %p93 = scmp.ne.s32.totalorder %s78, %s92
      %p94 = scmp.eq.s32.totalorder %s26, 0
      %p95 = por %p93, %p94
      %s96 = ssub.s32 %s20, %s27
      %p97 = scmp.eq.s32.totalorder %s96, 0
      %s99 = sadd.s32 %s98, 1
      %s100 = scalar_select %p97, %s98, %s99
      %p103 = pneg %p97
      %p104 = scmp.eq.s32.totalorder %s20, 1
      %p105 = por %p103, %p104
      %p106 = scmp.ne.s32.totalorder %s98, %s101
      %p107 = scmp.eq.s32.totalorder %s20, 0
      %p108 = por %p106, %p107
      %p109 = scmp.ne.s32.totalorder %s98, %s101
      %p110 = scmp.eq.s32.totalorder %s25, 1
      %p111 = por %p109, %p110
      %p112 = scmp.ne.s32.totalorder %s101, %s102
      %p113 = scmp.eq.s32.totalorder %s25, 0
      %p114 = por %p112, %p113
      %p115 = scmp.ne.s32.totalorder %s101, %s102
      %p116 = scmp.eq.s32.totalorder %s26, 1
      %p117 = por %p115, %p116
      %p119 = scmp.ne.s32.totalorder %s102, %s118
      %p120 = scmp.eq.s32.totalorder %s26, 0
      %p121 = por %p119, %p120
      %p122 = scmp.le.s32.totalorder 1, %s20
      %p123 = scmp.lt.s32.totalorder %s20, 3
      %p124 = pnand %p122, %p123
      %p125 = pneg %p124
      // Predicated region
      $region9: #{audio_preprocessing.1} parent=5 // pred_check
        _
      $region10: #{audio_preprocessing.1} parent=5 // pred_check_branch
        %127 = sbr.rel (%p124) target = $region12
      $region11: #{audio_preprocessing.1} parent=5 // pred_region
        %s128 = ssub.s32 %s20, 1
        // Predicated region
        $region13: #{audio_preprocessing.1} parent=11 // pred_check
          %p129 = pneg %p67
        $region14: #{audio_preprocessing.1} parent=11 // pred_check_branch
          %131 = sbr.rel (%p129) target = $region16
        $region15: #{audio_preprocessing.1} parent=11 // pred_region
          %133 = vsyncadd [#allocation5], 0
          %s134 = sshll.u32 %s2, 4
          %s135 = int_to_ptr.hbm [resolvable:$true] %s134
          %s136 = sshll.u32 [#allocation4], 4
          %s137 = int_to_ptr.vmem [resolvable:$true] %s136
          %142 = dma.hbm_to_vmem [thread:$0]  %s135, 2048, %s137, [#allocation5], 128, 128, 8
        $region16: #{audio_preprocessing.1} parent=11 // pred_fallthru
          _
        // Predicated region
        $region17: #{audio_preprocessing.1} parent=11 // pred_check
          %p143 = pneg %p88
        $region18: #{audio_preprocessing.1} parent=11 // pred_check_branch
          %145 = sbr.rel (%p143) target = $region20
        $region19: #{audio_preprocessing.1} parent=11 // pred_region
          %147 = vsyncadd [#allocation7], 0
          %s148 = sshll.u32 %s3, 4
          %s149 = int_to_ptr.hbm [resolvable:$true] %s148
          %s150 = sshll.u32 [#allocation6], 4
          %s151 = int_to_ptr.vmem [resolvable:$true] %s150
          %156 = dma.hbm_to_vmem [thread:$0]  %s149, 2048, %s151, [#allocation7], 128, 128, 8
        $region20: #{audio_preprocessing.1} parent=11 // pred_fallthru
          _
      $region12: #{audio_preprocessing.1} parent=5 // pred_fallthru
        _
      %p157 = scmp.lt.s32.totalorder %s20, 2
      // Predicated region
      $region21: #{audio_preprocessing.1} parent=5 // pred_check
        %p158 = pneg %p157
      $region22: #{audio_preprocessing.1} parent=5 // pred_check_branch
        %160 = sbr.rel (%p158) target = $region24
      $region23: #{audio_preprocessing.1} parent=5 // pred_region
        // Predicated region
        $region25: #{audio_preprocessing.1} parent=23 // pred_check
          %p161 = pneg %p40
        $region26: #{audio_preprocessing.1} parent=23 // pred_check_branch
          %163 = sbr.rel (%p161) target = $region28
        $region27: #{audio_preprocessing.1} parent=23 // pred_region
          %p164 = scmp.lt.s32.totalorder %s20, 1
          %s165 = scalar_select %p164, %s20, 1
          %s166 = smul.addr %s165, 3
          %s167 = smul.addr %s166, 8
          %s168 = scalar_lea.vmem %s1, %s167
        $region28: #{audio_preprocessing.1} parent=23 // pred_fallthru
          _
      $region24: #{audio_preprocessing.1} parent=5 // pred_fallthru
        _
      %p169 = scmp.le.s32.totalorder 1, %s20
      %p170 = scmp.lt.s32.totalorder %s20, 3
      %p171 = pnand %p169, %p170
      %p172 = pneg %p171
      // Predicated region
      $region29: #{audio_preprocessing.1} parent=5 // pred_check
        _
      $region30: #{audio_preprocessing.1} parent=5 // pred_check_branch
        %174 = sbr.rel (%p171) target = $region32
      $region31: #{audio_preprocessing.1} parent=5 // pred_region
        %s175 = ssub.s32 %s20, 1
        // Predicated region
        $region33: #{audio_preprocessing.1} parent=31 // pred_check
          %p176 = pneg %p67
        $region34: #{audio_preprocessing.1} parent=31 // pred_check_branch
          %178 = sbr.rel (%p176) target = $region36
        $region35: #{audio_preprocessing.1} parent=31 // pred_region
          %180 = dma.done [#allocation5], 2048
        $region36: #{audio_preprocessing.1} parent=31 // pred_fallthru
          _
        // Predicated region
        $region37: #{audio_preprocessing.1} parent=31 // pred_check
          %p181 = pneg %p88
        $region38: #{audio_preprocessing.1} parent=31 // pred_check_branch
          %183 = sbr.rel (%p181) target = $region40
        $region39: #{audio_preprocessing.1} parent=31 // pred_region
          %185 = dma.done [#allocation7], 2048
        $region40: #{audio_preprocessing.1} parent=31 // pred_fallthru
          _
        %p186 = scmp.lt.s32.totalorder %s25, 1
        %s187 = scalar_select %p186, %s25, 1
        %s188 = smul.addr %s187, 3
        %s189 = smul.addr %s188, 8
        %s190 = scalar_lea.vmem %s1, %s189
        %p191 = pneg %p46
        %p192 = pneg %p43
        %p193 = pneg %p67
        %p194 = pneg %p64
        %p195 = pneg %p88
        %p196 = pneg %p85
        %p197 = pneg %p114
        %p198 = pneg %p111
        %p199 = scmp.lt.s32.totalorder %s25, 1
        %s200 = scalar_select %p199, %s25, 1
        %s201 = smul.addr %s200, 8
        %s202 = smul.addr %s201, 8
        %s203 = scalar_lea.vmem %s4, %s202
        %p204 = scmp.lt.s32.totalorder %s25, 1
        %s205 = scalar_select %p204, %s25, 1
        %s206 = smul.addr %s205, 3
        %s207 = smul.addr %s206, 8
        %s208 = scalar_lea.vmem %s1, %s207
        %p209 = scmp.lt.s32.totalorder %s25, 1
        %s210 = scalar_select %p209, %s25, 1
        %s211 = smul.addr %s210, 8
        %s212 = smul.addr %s211, 8
        %s213 = scalar_lea.vmem %s4, %s212
        %v214 = vld [vmem:[%s208] sm:$0xff]
        %v215 = vld [vmem:[%s208 + $0x8] sm:$0xff]
        %v216 = vld [vmem:[%s208 + $0x10] sm:$0xff]
        %vm220 = vcmask 1046528
        %v221 = vrot.slane %v214, 1
        %v222 = vrot.slane %v215, 1
        %v223 = vsel %vm220, %v221, %v222
        %v224 = vrot.slane %v216, 1
        %v225 = vsel %vm220, %v222, %v224
        %226 = vrot.lane.b32.xlu0 %v223, 64
        %v227 = vpop.permute.xlu0 %226
        %228 = vrot.lane.b32.xlu0 %v225, 64
        %v229 = vpop.permute.xlu0 %228
        %vm232 = vcmask 523264
        %v233 = vsel %vm232, %v214, %v227
        %v234 = vsel %vm232, %v215, %v229
        %v235 = vld [vmem:[#allocation4] sm:$0xff]
        %v236 = vld [vmem:[#allocation4 + $0x8] sm:$0xff]
        %v237 = vld [vmem:[#allocation4 + $0x10] sm:$0xff]
        %v238 = vld [vmem:[#allocation4 + $0x18] sm:$0xff]
        %v239 = vld [vmem:[#allocation4 + $0x20] sm:$0xff]
        %v240 = vld [vmem:[#allocation4 + $0x28] sm:$0xff]
        %v241 = vld [vmem:[#allocation4 + $0x30] sm:$0xff]
        %v242 = vld [vmem:[#allocation4 + $0x38] sm:$0xff]
        %v243 = vld [vmem:[#allocation4 + $0x40] sm:$0xff]
        %v244 = vld [vmem:[#allocation4 + $0x48] sm:$0xff]
        %v245 = vld [vmem:[#allocation4 + $0x50] sm:$0xff]
        %v246 = vld [vmem:[#allocation4 + $0x58] sm:$0xff]
        %v247 = vld [vmem:[#allocation4 + $0x60] sm:$0xff]
        %v248 = vld [vmem:[#allocation4 + $0x68] sm:$0xff]
        %v249 = vld [vmem:[#allocation4 + $0x70] sm:$0xff]
        %v250 = vld [vmem:[#allocation4 + $0x78] sm:$0xff]
        %251 = vmatpush.msra.mxu0 %v250
        %252 = vmatpush.msra.mxu0 %v249
        %253 = vmatpush.msra.mxu0 %v248
        %254 = vmatpush.msra.mxu0 %v247
        %255 = vmatpush.msra.mxu0 %v246
        %256 = vmatpush.msra.mxu0 %v245
        %257 = vmatpush.msra.mxu0 %v244
        %258 = vmatpush.msra.mxu0 %v243
        %259 = vmatpush.msra.mxu0 %v242
        %260 = vmatpush.msra.mxu0 %v241
        %261 = vmatpush.msra.mxu0 %v240
        %262 = vmatpush.msra.mxu0 %v239
        %263 = vmatpush.msra.mxu0 %v238
        %264 = vmatpush.msra.mxu0 %v237
        %265 = vmatpush.msra.mxu0 %v236
        %266 = vmatpush.msra.mxu0 %v235
        %267 = vmatmul.f32.gmra.mxu0 %v233
        %v268 = vpop.f32.mrf.mxu0
        %v269 = vadd.f32 0.0, %v268
        %270 = vmatmul.f32.gmra.mxu0 %v234
        %v271 = vpop.f32.mrf.mxu0
        %v272 = vadd.f32 0.0, %v271
        %273 = vdwg.mxu0
        %v274 = vmul.f32 %v269, %v269
        %v275 = vmul.f32 %v272, %v272
        %v276 = vld [vmem:[#allocation6] sm:$0xff]
        %v277 = vld [vmem:[#allocation6 + $0x8] sm:$0xff]
        %v278 = vld [vmem:[#allocation6 + $0x10] sm:$0xff]
        %v279 = vld [vmem:[#allocation6 + $0x18] sm:$0xff]
        %v280 = vld [vmem:[#allocation6 + $0x20] sm:$0xff]
        %v281 = vld [vmem:[#allocation6 + $0x28] sm:$0xff]
        %v282 = vld [vmem:[#allocation6 + $0x30] sm:$0xff]
        %v283 = vld [vmem:[#allocation6 + $0x38] sm:$0xff]
        %v284 = vld [vmem:[#allocation6 + $0x40] sm:$0xff]
        %v285 = vld [vmem:[#allocation6 + $0x48] sm:$0xff]
        %v286 = vld [vmem:[#allocation6 + $0x50] sm:$0xff]
        %v287 = vld [vmem:[#allocation6 + $0x58] sm:$0xff]
        %v288 = vld [vmem:[#allocation6 + $0x60] sm:$0xff]
        %v289 = vld [vmem:[#allocation6 + $0x68] sm:$0xff]
        %v290 = vld [vmem:[#allocation6 + $0x70] sm:$0xff]
        %v291 = vld [vmem:[#allocation6 + $0x78] sm:$0xff]
        %292 = vmatpush.msra.mxu0 %v291
        %293 = vmatpush.msra.mxu0 %v290
        %294 = vmatpush.msra.mxu0 %v289
        %295 = vmatpush.msra.mxu0 %v288
        %296 = vmatpush.msra.mxu0 %v287
        %297 = vmatpush.msra.mxu0 %v286
        %298 = vmatpush.msra.mxu0 %v285
        %299 = vmatpush.msra.mxu0 %v284
        %300 = vmatpush.msra.mxu0 %v283
        %301 = vmatpush.msra.mxu0 %v282
        %302 = vmatpush.msra.mxu0 %v281
        %303 = vmatpush.msra.mxu0 %v280
        %304 = vmatpush.msra.mxu0 %v279
        %305 = vmatpush.msra.mxu0 %v278
        %306 = vmatpush.msra.mxu0 %v277
        %307 = vmatpush.msra.mxu0 %v276
        %308 = vmatmul.f32.gmra.mxu0 %v274
        %v309 = vpop.f32.mrf.mxu0
        %v310 = vadd.f32 1e-20, %v309
        %311 = vmatmul.f32.gmra.mxu0 %v275
        %v312 = vpop.f32.mrf.mxu0
        %v313 = vadd.f32 1e-20, %v312
        %314 = vdwg.mxu0
        %v315 = vlog2.pop %v310
        %v316 = vmul.f32 %v315, 0.6931472
        %v317 = vlog2.pop %v313
        %v318 = vmul.f32 %v317, 0.6931472
        %s319 = sld [smem:[#allocation3 + %s25]]
        %v320 = vlaneseq
        %v321 = vshrl.u32 %v320, 7
        %v322 = vadd.s32 %v321, 8
        %v323 = vstv %s319
        %vm324 = vcmp.lt.s32.totalorder %v321, %v323
        %vm325 = vcmp.lt.s32.totalorder %v322, %v323
        %p326 = scmp.gt.s32.totalorder %s319, 1
        %s327 = scalar_select %p326, %s319, 1
        %s328 = scvt.s32.f32 %s327
        %s329 = ssub.s32 %s319, 1
        %p330 = scmp.gt.s32.totalorder %s329, 1
        %s331 = scalar_select %p330, %s329, 1
        %s332 = scvt.s32.f32 %s331
        %v333 = vsel %vm324, 1, 0
        %v334 = vsel %vm325, 1, 0
        %vm335 = vcmp.eq.s32.totalorder %v333, 1
        %vm336 = vcmp.eq.s32.totalorder %v334, 1
        %v337 = vsel %vm335, %v316, 0.0
        %v338 = vsel %vm336, %v318, 0.0
        %v339 = vadd.f32 %v337, %v338
        %v340 = vrot.slane %v339, 4
        %v341 = vadd.f32 %v339, %v340
        %v342 = vrot.slane %v341, 2
        %v343 = vadd.f32 %v341, %v342
        %v344 = vrot.slane %v343, 1
        %v345 = vadd.f32 %v343, %v344
        %v346 = vstv %s328
        %v347 = vrcp.pop %v346
        %v348 = vmul.f32 %v346, %v347
        %v349 = vsub.f32 1.0, %v348
        %v350 = vmul.f32 %v347, %v349
        %v351 = vadd.f32 %v347, %v350
        %vm352 = vweird.f32 %v346
        %vm353 = vweird.f32 %v347
        %vm354 = vmor %vm352, %vm353
        %v355 = vsel %vm354, %v347, %v351
        %v356 = vand.u32 2147483647, %v346
        %vm357 = vcmp.eq.f32.partialorder %v356, 8.507059e+37
        %v358 = vand.u32 %v346, 2147483648
        %v359 = vor.u32 1.1754944e-38, %v358
        %v360 = vsel %vm357, %v359, %v355
        %v361 = vmul.f32 %v345, %v360
        %v362 = vsub.f32 %v316, %v361
        %v363 = vsub.f32 %v318, %v361
        %v364 = vsel %vm335, %v362, 0.0
        %v365 = vsel %vm336, %v363, 0.0
        %v366 = vmul.f32 %v364, %v364
        %v367 = vmul.f32 %v365, %v365
        %v368 = vadd.f32 %v366, %v367
        %v369 = vrot.slane %v368, 4
        %v370 = vadd.f32 %v368, %v369
        %v371 = vrot.slane %v370, 2
        %v372 = vadd.f32 %v370, %v371
        %v373 = vrot.slane %v372, 1
        %v374 = vadd.f32 %v372, %v373
        %v375 = vstv %s332
        %v376 = vrcp.pop %v375
        %v377 = vmul.f32 %v375, %v376
        %v378 = vsub.f32 1.0, %v377
        %v379 = vmul.f32 %v376, %v378
        %v380 = vadd.f32 %v376, %v379
        %vm381 = vweird.f32 %v375
        %vm382 = vweird.f32 %v376
        %vm383 = vmor %vm381, %vm382
        %v384 = vsel %vm383, %v376, %v380
        %v385 = vand.u32 2147483647, %v375
        %vm386 = vcmp.eq.f32.partialorder %v385, 8.507059e+37
        %v387 = vand.u32 %v375, 2147483648
        %v388 = vor.u32 1.1754944e-38, %v387
        %v389 = vsel %vm386, %v388, %v384
        %v390 = vmul.f32 %v374, %v389
        %v391 = vrsqrt.pop %v390
        %v392 = vmul.f32 %v391, %v390
        %v393 = vmul.f32 %v392, %v391
        %v394 = vmul.f32 0.5, %v393
        %v395 = vsub.f32 1.5, %v394
        %v396 = vmul.f32 %v391, %v395
        %v397 = vmul.f32 %v390, %v396
        %vm398 = vcmp.eq.f32.partialorder %v390, inf
        %v399 = vsel %vm398, %v390, %v397
        %vm400 = vcmp.eq.f32.partialorder %v390, 0.0
        %v401 = vand.u32 %v390, 2147483648
        %v402 = vsel %vm400, %v401, %v399
        %v403 = vadd.f32 %v402, 1e-05
        %v404 = vrcp.pop %v403
        %v405 = vmul.f32 %v364, %v404
        %v406 = vmul.f32 %v365, %v404
        %407 = vxpose.xlu0.b32.start [1/16] %v405, 128
        %408 = vxpose.xlu0.b32.cont [2/16] %v406, 128
        %409 = vxpose.xlu0.b32.cont [3/16] 0.0, 128
        %410 = vxpose.xlu0.b32.cont [4/16] 0.0, 128
        %411 = vxpose.xlu0.b32.cont [5/16] 0.0, 128
        %412 = vxpose.xlu0.b32.cont [6/16] 0.0, 128
        %413 = vxpose.xlu0.b32.cont [7/16] 0.0, 128
        %414 = vxpose.xlu0.b32.cont [8/16] 0.0, 128
        %415 = vxpose.xlu0.b32.cont [9/16] 0.0, 128
        %416 = vxpose.xlu0.b32.cont [10/16] 0.0, 128
        %417 = vxpose.xlu0.b32.cont [11/16] 0.0, 128
        %418 = vxpose.xlu0.b32.cont [12/16] 0.0, 128
        %419 = vxpose.xlu0.b32.cont [13/16] 0.0, 128
        %420 = vxpose.xlu0.b32.cont [14/16] 0.0, 128
        %421 = vxpose.xlu0.b32.cont [15/16] 0.0, 128
        %422 = vxpose.xlu0.b32.end [16/16] 0.0, 128
        %v423 = vpop.trf.xlu0
        %v424 = vpop.trf.xlu0
        %v425 = vpop.trf.xlu0
        %v426 = vpop.trf.xlu0
        %v427 = vpop.trf.xlu0
        %v428 = vpop.trf.xlu0
        %v429 = vpop.trf.xlu0
        %v430 = vpop.trf.xlu0
        %v431 = vpop.trf.xlu0
        %v432 = vpop.trf.xlu0
        %v433 = vpop.trf.xlu0
        %v434 = vpop.trf.xlu0
        %v435 = vpop.trf.xlu0
        %v436 = vpop.trf.xlu0
        %v437 = vpop.trf.xlu0
        %v438 = vpop.trf.xlu0
        %vm439 = vcmask 130048
        %440 = vst.msk [vmem:[%s213] sm:$0xff] %vm439, %v423
        %441 = vst.msk [vmem:[%s213 + $0x8] sm:$0xff] %vm439, %v424
        %442 = vst.msk [vmem:[%s213 + $0x10] sm:$0xff] %vm439, %v425
        %443 = vst.msk [vmem:[%s213 + $0x18] sm:$0xff] %vm439, %v426
        %444 = vst.msk [vmem:[%s213 + $0x20] sm:$0xff] %vm439, %v427
        %445 = vst.msk [vmem:[%s213 + $0x28] sm:$0xff] %vm439, %v428
        %446 = vst.msk [vmem:[%s213 + $0x30] sm:$0xff] %vm439, %v429
        %447 = vst.msk [vmem:[%s213 + $0x38] sm:$0xff] %vm439, %v430
        %p448 = scmp.lt.s32.totalorder %s25, 1
        %s449 = scalar_select %p448, %s25, 1
        %s450 = smul.addr %s449, 8
        %s451 = smul.addr %s450, 8
        %s452 = scalar_lea.vmem %s4, %s451
        // Predicated region
        $region41: #{audio_preprocessing.1} parent=31 // pred_check
          %p453 = pneg %p111
        $region42: #{audio_preprocessing.1} parent=31 // pred_check_branch
          %455 = sbr.rel (%p453) target = $region44
        $region43: #{audio_preprocessing.1} parent=31 // pred_region
          _
        $region44: #{audio_preprocessing.1} parent=31 // pred_fallthru
          _
      $region32: #{audio_preprocessing.1} parent=5 // pred_fallthru
        _
      %p456 = scmp.le.s32.totalorder 2, %s20
      // Predicated region
      $region45: #{audio_preprocessing.1} parent=5 // pred_check
        %p457 = pneg %p456
      $region46: #{audio_preprocessing.1} parent=5 // pred_check_branch
        %459 = sbr.rel (%p457) target = $region48
      $region47: #{audio_preprocessing.1} parent=5 // pred_region
        %s460 = ssub.s32 %s20, 2
        // Predicated region
        $region49: #{audio_preprocessing.1} parent=47 // pred_check
          %p461 = pneg %p117
        $region50: #{audio_preprocessing.1} parent=47 // pred_check_branch
          %463 = sbr.rel (%p461) target = $region52
        $region51: #{audio_preprocessing.1} parent=47 // pred_region
          %p464 = scmp.lt.s32.totalorder %s26, 1
          %s465 = scalar_select %p464, %s26, 1
          %s466 = smul.addr %s465, 8
          %s467 = smul.addr %s466, 8
          %s468 = scalar_lea.vmem %s4, %s467
        $region52: #{audio_preprocessing.1} parent=47 // pred_fallthru
          _
      $region48: #{audio_preprocessing.1} parent=5 // pred_fallthru
        _
    $region6: #{audio_preprocessing.1} parent=1 // loop_footer
      %s24 = sadd.s32 1, %s20
    $region7: #{audio_preprocessing.1} parent=1 // loop_footer_branch
      %19 = sbr.rel target = $region3
    $region8: #{audio_preprocessing.1} parent=1 // loop_exit
      _
    %469 = vsyncpa [#allocation5], 1
    %s470 = scalar_lea.sflag [#allocation5], 1
    %471 = vsyncpa %s470, 1
    %472 = vsyncpa [#allocation7], 1

</llo_original>
